<compile_context>
chip_gen: v6e
topology: v6e:2x2x1
jax: 0.10.0
libtpu: 0.0.40
codegen_flags: <defaults>
</compile_context>

<pallas_src>
import functools

import numpy as np
import jax
import jax.numpy as jnp
from jax.experimental import pallas as pl
from jax.experimental.pallas import tpu as pltpu

_LANES = 128
_TARGET_BLOCK_ROWS = 1024      # 1024 x 128 x 4B = 512 KiB per block buffer


def _round_up(v, m):
    return ((v + m - 1) // m) * m


# ----------------------------- kernels --------------------------------------

def _partial_sumsq_kernel(x_ref, o_ref):
    """Per-grid-block partial sum of x**2, kept as an (8, 128) vector partial
    so per-step work is pure VPU multiply-adds; the final cross-lane reduce of
    the tiny partials array happens outside the kernel."""
    xf = x_ref[...].astype(jnp.float32)
    sq = xf * xf
    o_ref[...] = jnp.sum(sq.reshape(-1, 8, _LANES), axis=0)


def _scale_kernel(x_ref, o_ref, *, scale):
    """Noiseless channel: out = sqrt(power) * x (exact copy when scale == 1)."""
    if scale == 1.0:
        o_ref[...] = x_ref[...]
    else:
        o_ref[...] = (scale * x_ref[...].astype(jnp.float32)).astype(o_ref.dtype)


def _awgn_kernel(amp_ref, x_ref, n_ref, o_ref, *, sqrt_power):
    """AWGN channel: out = sqrt(power) * x + amp * z,  amp = sigma*sqrt(2*avg)."""
    amp = amp_ref[0]
    o_ref[...] = (sqrt_power * x_ref[...].astype(jnp.float32)
                  + amp * n_ref[...]).astype(o_ref.dtype)


# ----------------------------- wrapper ---------------------------------------

def _blocking(n):
    rows = pl.cdiv(n, _LANES)
    block_rows = min(_TARGET_BLOCK_ROWS, _round_up(rows, 8))
    padded_rows = _round_up(rows, block_rows)
    return block_rows, padded_rows, padded_rows // block_rows


def _as_2d(flat, padded_rows):
    pad = padded_rows * _LANES - flat.size
    if pad:
        flat = jnp.pad(flat, (0, pad))
    return flat.reshape(padded_rows, _LANES)


def channel_apply(x, chan_type="awgn", chan_param=10.0, avg_pwr=None,
                  power=1.0, seed=0):
    """JAX/Pallas equivalent of Channel.forward. Returns (channel_rx, usage)."""
    orig_shape = x.shape
    n = x.size
    assert n % 2 == 0, "need an even number of elements (real/imag pairs)"
    channel_usage = n // 2
    sqrt_power = float(np.sqrt(power))

    block_rows, padded_rows, num_blocks = _blocking(n)
    x2d = _as_2d(x.reshape(-1), padded_rows)

    blk = pl.BlockSpec((block_rows, _LANES), lambda i: (i, 0))
    parallel = pltpu.CompilerParams(dimension_semantics=("parallel",))

    if chan_type in (0, "noiseless"):
        # /sqrt(2*avg_pwr) and *sqrt(2*avg_pwr) cancel exactly: out = sqrt(power)*x.
        # No reduction pass, single HBM read + write.
        out2d = pl.pallas_call(
            functools.partial(_scale_kernel, scale=sqrt_power),
            out_shape=jax.ShapeDtypeStruct(x2d.shape, x.dtype),
            grid=(num_blocks,),
            in_specs=[blk],
            out_specs=blk,
            compiler_params=parallel,
        )(x2d)

    elif chan_type in (1, "awgn"):
        if avg_pwr is None:
            partials = pl.pallas_call(
                _partial_sumsq_kernel,
                out_shape=jax.ShapeDtypeStruct((num_blocks * 8, _LANES),
                                               jnp.float32),
                grid=(num_blocks,),
                in_specs=[blk],
                out_specs=pl.BlockSpec((8, _LANES), lambda i: (i, 0)),
                compiler_params=parallel,
            )(x2d)
            avg_pwr = jnp.sum(partials) / n     # zero padding contributes nothing

        sigma = float(np.sqrt(1.0 / (2.0 * 10.0 ** (chan_param / 10.0))))
        amp = sigma * jnp.sqrt(2.0 * jnp.asarray(avg_pwr, jnp.float32))
        amp_arr = jnp.reshape(amp, (1,)).astype(jnp.float32)

        # TODO(synk): on real TPU, pltpu.prng_seed/stateful_normal could generate
        # the noise on-chip and avoid streaming it from HBM, but those primitives
        # have no CPU/interpret lowering, so the noise is generated with
        # jax.random and fed in as a regular tiled input.
        noise2d = jax.random.normal(jax.random.PRNGKey(seed), x2d.shape,
                                    jnp.float32)

        out2d = pl.pallas_call(
            functools.partial(_awgn_kernel, sqrt_power=sqrt_power),
            out_shape=jax.ShapeDtypeStruct(x2d.shape, x.dtype),
            grid=(num_blocks,),
            in_specs=[
                pl.BlockSpec(memory_space=pltpu.MemorySpace.SMEM),  # amp (1,)
                blk,                                                # x
                blk,                                                # noise
            ],
            out_specs=blk,
            compiler_params=parallel,
        )(amp_arr, x2d, noise2d)

    else:
        raise ValueError(f"unsupported channel type: {chan_type!r}")

    out_flat = out2d.reshape(-1)
    if out_flat.size != n:
        out_flat = out_flat[:n]
    return out_flat.reshape(orig_shape), channel_usage


if __name__ == "__main__":
    key = jax.random.PRNGKey(0)
    # NCHW-shaped input, consistent with the conv-feature tensors this channel
    # module is normally applied to.
    x = jax.random.normal(key, (2, 4, 16, 16), dtype=jnp.float32)

    # AWGN channel (chan_param = SNR in dB); avg power computed by the
    # partial-sum reduction kernel.
    rx, usage = channel_apply(x, chan_type="awgn", chan_param=10.0, seed=0)
    rx = jax.block_until_ready(rx)
    assert rx.shape == x.shape and rx.dtype == x.dtype
    assert usage == x.size // 2
    assert bool(jnp.all(jnp.isfinite(rx)))
    # Noise-level sanity: std(rx - x) should be ~ sigma * sqrt(2 * mean(x^2)).
    sigma = float(np.sqrt(1.0 / (2.0 * 10.0 ** (10.0 / 10.0))))
    expected_std = sigma * float(jnp.sqrt(2.0 * jnp.mean(x ** 2)))
    measured_std = float(jnp.std(rx - x))
    assert 0.7 * expected_std < measured_std < 1.3 * expected_std, (
        measured_std, expected_std)

    # Noiseless channel: exact identity (normalize/rescale cancel, power=1).
    rx0, usage0 = channel_apply(x, chan_type="noiseless")
    rx0 = jax.block_until_ready(rx0)
    assert usage0 == x.size // 2
    assert bool(jnp.array_equal(rx0, x))

    # Shape that is not a multiple of 8*128 exercises the padding path.
    y = jax.random.normal(jax.random.PRNGKey(1), (2, 3, 5, 10),
                          dtype=jnp.float32)
    ry, usage_y = channel_apply(y, chan_type="noiseless", power=4.0)
    ry = jax.block_until_ready(ry)
    assert usage_y == y.size // 2
    assert bool(jnp.allclose(ry, 2.0 * y, atol=1e-6, rtol=1e-6))

    print("KERNEL_OK")
</pallas_src>

<mosaic_0001>
module attributes {stable_mosaic.version = 11 : i64} {
  func.func @_partial_sumsq_kernel(%arg0: i32, %arg1: memref<16x128xf32, #tpu.memory_space<vmem>>, %arg2: memref<8x128xf32, #tpu.memory_space<vmem>>) attributes {dimension_semantics = [#tpu.dimension_semantics<parallel>], iteration_bounds = array<i64: 1>, scalar_prefetch = 0 : i64, scratch_operands = 0 : i64, tpu.core_type = #tpu.core_type<tc>, window_params = [{transform_indices = @transform_0, window_bounds = array<i64: 16, 128>}, {transform_indices = @transform_1, window_bounds = array<i64: 8, 128>}]} {
    %c0 = arith.constant 0 : index
    %c0_0 = arith.constant 0 : index
    %0 = vector.load %arg1[%c0, %c0_0] : memref<16x128xf32, #tpu.memory_space<vmem>>, vector<16x128xf32>
    %1 = arith.mulf %0, %0 : vector<16x128xf32>
    %2 = vector.shape_cast %1 : vector<16x128xf32> to vector<2x8x128xf32>
    %cst = arith.constant dense<0.000000e+00> : vector<8x128xf32>
    %3 = vector.multi_reduction <add>, %2, %cst [0] : vector<2x8x128xf32> to vector<8x128xf32>
    %c0_1 = arith.constant 0 : index
    %c0_2 = arith.constant 0 : index
    %4 = vector.load %arg2[%c0_1, %c0_2] : memref<8x128xf32, #tpu.memory_space<vmem>>, vector<8x128xf32>
    tpu.vector_store %arg2[%c0_1, %c0_2], %3 {strides = array<i32>} : memref<8x128xf32, #tpu.memory_space<vmem>>, vector<8x128xf32>,
    return
  }
  func.func @transform_0(%arg0: i32) -> (i32, i32) {
    %c0_i32 = arith.constant 0 : i32
    %c0_i32_0 = arith.constant 0 : i32
    return %arg0, %c0_i32 : i32, i32
  }
  func.func @transform_1(%arg0: i32) -> (i32, i32) {
    %c0_i32 = arith.constant 0 : i32
    %c0_i32_0 = arith.constant 0 : i32
    return %arg0, %c0_i32 : i32, i32
  }
}

</mosaic_0001>

<llo_original>
// kernel: tpu_custom_call.1
$region0: #{tpu_custom_call.1}
  #allocation0 [shape = 'u32[]', space=smem, size = 0x4, offset = 0x4, fixed_abs, tag = 'smem constant byte address 0x4 - core index']
  #allocation1 [shape = 'u32[144,128]{1,0:T(1,128)}', space=vmem, size = 0x12000, scoped, tag = 'internal scratch']
  %s0 = inlined_call_operand.hbm [shape: f32[16,128], index: 0, kind: input, shape index: {}]
  %s1 = inlined_call_operand.hbm [shape: f32[8,128], index: 1, kind: output, shape index: {}]
  %s2 = sld [smem:[#allocation0]]
  $region18: #{tpu_custom_call.1} parent=0
    _
  %s4 = ssub.s32 1, %s2
  %s5 = scalar_select 0, %s4, %s2
  $region1: #{tpu_custom_call.1} parent=0
    #allocation2 [shape = 'u8[8192]{0}', space=vmem, size = 0x2000, scoped, tag = 'input window, operand 0, single buffered']
    #allocation3 [shape = 's32[1]{0}', space=sflag, size = 0x4, scoped, tag = 'scoped memory for tpu_custom_call.1']
    #allocation4 [shape = 's32[1]{0}', space=sflag, size = 0x4, scoped, tag = 'scoped memory for tpu_custom_call.1']
    #allocation5 [shape = 'u8[4096]{0}', space=vmem, size = 0x1000, scoped, tag = 'output window, operand 0, single buffered']
    %6 = vsyncpa [#allocation3], 0
    %7 = vsyncpa [#allocation4], 0
    // Predicated region
    $region2: #{tpu_custom_call.1} parent=1 // pred_check
      _
    $region3: #{tpu_custom_call.1} parent=1 // pred_check_branch
      %9 = sbr.rel (0) target = $region5
    $region4: #{tpu_custom_call.1} parent=1 // pred_region
      %s11 = ssub.s32 256, 256
      %12 = vsyncadd [#allocation3], %s11
      %s13 = sshll.u32 [#allocation2], 4
      %s14 = int_to_ptr.vmem [resolvable:$true] %s13
      %19 = dma.hbm_to_vmem [thread:$0]  %s0, 256, %s14, [#allocation3], 128, 128, 8
    $region5: #{tpu_custom_call.1} parent=1 // pred_fallthru
      _
    // Predicated region
    $region6: #{tpu_custom_call.1} parent=1 // pred_check
      _
    $region7: #{tpu_custom_call.1} parent=1 // pred_check_branch
      %21 = sbr.rel (0) target = $region9
    $region8: #{tpu_custom_call.1} parent=1 // pred_region
      %22 = dma.done [#allocation3], 256
    $region9: #{tpu_custom_call.1} parent=1 // pred_fallthru
      _
    %v23 = vld [vmem:[#allocation2] sm:$0xff]
    %v24 = vld [vmem:[#allocation2 + $0x8] sm:$0xff]
    %v25 = vmul.f32 %v23, %v23
    %v26 = vmul.f32 %v24, %v24
    %v27 = vadd.f32 %v25, %v26
    %28 = vst [vmem:[#allocation5] sm:$0xff] %v27
    // Predicated region
    $region10: #{tpu_custom_call.1} parent=1 // pred_check
      _
    $region11: #{tpu_custom_call.1} parent=1 // pred_check_branch
      %30 = sbr.rel (0) target = $region13
    $region12: #{tpu_custom_call.1} parent=1 // pred_region
      %s32 = ssub.s32 128, 128
      %33 = vsyncadd [#allocation4], %s32
      %s35 = sshll.u32 [#allocation5], 4
      %s36 = int_to_ptr.vmem [resolvable:$true] %s35
      %38 = dma.vmem_to_hbm [thread:$0]  %s36, 128, %s1, [#allocation4]
    $region13: #{tpu_custom_call.1} parent=1 // pred_fallthru
      _
    // Predicated region
    $region14: #{tpu_custom_call.1} parent=1 // pred_check
      _
    $region15: #{tpu_custom_call.1} parent=1 // pred_check_branch
      %40 = sbr.rel (0) target = $region17
    $region16: #{tpu_custom_call.1} parent=1 // pred_region
      %41 = dma.done [#allocation4], 128
    $region17: #{tpu_custom_call.1} parent=1 // pred_fallthru
      _
    %42 = vsyncpa [#allocation3], 1
    %43 = vsyncpa [#allocation4], 1

</llo_original>
